<compile_context>
chip_gen: v6e
topology: v6e:2x2x1
jax: 0.10.0
libtpu: 0.0.40
codegen_flags: <defaults>
</compile_context>

<pallas_src>
import math
from functools import partial

import numpy as np
import jax
import jax.numpy as jnp
from jax.experimental import pallas as pl
from jax.experimental.pallas import tpu as pltpu


def get_sinusoid_encoding_table(t_seq, d_model):
    """Deterministic sinusoid table, identical semantics to the PyTorch helper."""
    pos = np.arange(t_seq, dtype=np.float64)[:, None]           # (T, 1)
    i_model = np.arange(d_model, dtype=np.float64)[None, :]     # (1, D)
    angle = pos / np.power(10000.0, 2.0 * np.floor(i_model / 2.0) / d_model)
    table = np.array(angle)
    table[:, 0::2] = np.sin(table[:, 0::2])
    table[:, 1::2] = np.cos(table[:, 1::2])
    return table.astype(np.float32)                              # (T, D)


# ----------------------------- kernels --------------------------------------

def _pe_add_tiled_kernel(x_ref, tab_ref, o_ref):
    # x_ref/o_ref/tab_ref: (ts, lanes) -- batch dim squeezed out by BlockSpec.
    o_ref[...] = x_ref[...] + tab_ref[...]


def _pe_add_resident_kernel(ts, x_ref, tab_ref, o_ref):
    # tab_ref holds the whole (padded) table in VMEM; slice the current row
    # tile. `start` is always a multiple of ts (and ts is a multiple of 8
    # whenever there is more than one tile), so the load is aligned.
    s = pl.program_id(0)
    start = pl.multiple_of(s * ts, ts)
    o_ref[...] = x_ref[...] + tab_ref[pl.ds(start, ts), :]


# ----------------------------- wrapper --------------------------------------

def _vmem_capacity_bytes():
    """Per-TensorCore VMEM capacity; conservative 64 MiB (v7x) fallback."""
    try:
        info = pltpu.get_tpu_info()
        cap = int(getattr(info, "vmem_capacity_bytes", 0))
        if cap > 0:
            return cap
    except Exception:
        pass
    return 64 * 1024 * 1024


def positional_encoding(x, sinusoid_table):
    """x: (B, S, D), sinusoid_table: (T, D) with T >= S. Returns x + table[:S]."""
    B, S, D = x.shape
    T = sinusoid_table.shape[0]
    if T < S:
        raise ValueError(f"sinusoid table length {T} < sequence length {S}")

    # NOTE: PyTorch performs the add in the fp32 buffer dtype before any
    # downcast; casting the table to x.dtype instead (bf16 x -> bf16 add)
    # halves HBM traffic for this bandwidth-bound op. Numerically negligible
    # for a positional add; with fp32 activations (the default) it's exact.
    tab = sinusoid_table[:S, :].astype(x.dtype)                  # (S, D)

    # ---- lane-dense layout (pad S instead of degrading to masked stores) ----
    fold = 1
    S_p = S
    if D % 128 != 0:
        fold = 128 // math.gcd(D, 128)
        pad = (-S) % fold
        if pad:
            x = jnp.pad(x, ((0, 0), (0, pad), (0, 0)))
            tab = jnp.pad(tab, ((0, pad), (0, 0)))
            S_p = S + pad
    rows, lanes = S_p // fold, fold * D                          # lanes % 128 == 0
    x2 = x.reshape(B, rows, lanes)
    tab2 = tab.reshape(rows, lanes)

    itemsize = int(np.dtype(x.dtype).itemsize)
    bytes_per_row = lanes * itemsize
    table_bytes = rows * bytes_per_row

    # ---- VMEM budgeting (generation-aware) -----------------------------------
    vmem_cap = _vmem_capacity_bytes()            # 64 MiB (v7x) or 128 MiB (v5e/v6e)
    usable = (vmem_cap * 3) // 4                 # headroom for Mosaic scratch

    # Table goes fully VMEM-resident if, even double-buffered (worst case),
    # it takes at most a third of the usable budget; x/out tiles get the rest.
    table_resident = 2 * table_bytes <= usable // 3
    if table_resident:
        block_budget = (usable - 2 * table_bytes) // 4   # x + out, 2 buffers each
    else:
        block_budget = usable // 6                       # x + out + tab, 2 buffers each
    block_budget = max(1 << 20, min(block_budget, 16 << 20))

    # Row-tile size purely from the byte budget (no row-count cap).
    ts = max(8, block_budget // max(1, bytes_per_row))
    ts = min(ts, rows)
    if rows >= 16:
        ts = min(ts, (rows + 1) // 2)     # >= 2 row tiles so both v7x TCs get work
    if ts < rows:
        ts = max(8, (ts // 8) * 8)        # keep (8, 128) sublane alignment
    num_row_tiles = pl.cdiv(rows, ts)

    # Batch innermost and "arbitrary": consecutive grid steps keep the same
    # table block index, so Pallas never re-DMAs the table per batch step.
    grid = (num_row_tiles, B)

    if table_resident:
        rows_tab = num_row_tiles * ts
        if rows_tab > rows:
            # pad so in-kernel pl.ds slicing of the last tile stays in bounds
            tab2 = jnp.pad(tab2, ((0, rows_tab - rows), (0, 0)))
        tab_spec = pl.BlockSpec((rows_tab, lanes), lambda s, b: (0, 0))
        kernel = partial(_pe_add_resident_kernel, ts)
        table_vmem = 2 * rows_tab * bytes_per_row        # conservative (2 bufs)
    else:
        tab_spec = pl.BlockSpec((ts, lanes), lambda s, b: (s, 0))
        kernel = _pe_add_tiled_kernel
        table_vmem = 2 * ts * bytes_per_row

    # vmem limit from the actual buffer math (+ slack), clamped to capacity.
    block_bytes = ts * bytes_per_row
    vmem_need = 4 * block_bytes + table_vmem + (4 << 20)
    vmem_limit = int(max(16 << 20, min(vmem_need, vmem_cap - (8 << 20))))

    out2 = pl.pallas_call(
        kernel,
        out_shape=jax.ShapeDtypeStruct((B, rows, lanes), x.dtype),
        grid_spec=pltpu.PrefetchScalarGridSpec(
            num_scalar_prefetch=0,
            grid=grid,
            in_specs=[
                pl.BlockSpec((pl.Squeezed(), ts, lanes), lambda s, b: (b, s, 0)),
                tab_spec,
            ],
            out_specs=pl.BlockSpec((pl.Squeezed(), ts, lanes),
                                   lambda s, b: (b, s, 0)),
        ),
        compiler_params=pltpu.CompilerParams(
            # Row-tile axis parallel (megacore sharding on v7x); batch axis
            # arbitrary so the table-reuse-across-batch ordering is guaranteed.
            dimension_semantics=("parallel", "arbitrary"),
            vmem_limit_bytes=vmem_limit,
        ),
    )(x2, tab2)

    out = out2.reshape(B, S_p, D)
    if S_p != S:
        out = out[:, :S, :]
    return out


if __name__ == "__main__":
    # Small shapes consistent with the module's forward: x is (batch, seq, d_model)
    B, S, D = 2, 8, 32
    T_SEQ = 16  # table length >= seq length of x

    key = jax.random.PRNGKey(0)
    x = jax.random.normal(key, (B, S, D), dtype=jnp.float32)
    table = jnp.asarray(get_sinusoid_encoding_table(T_SEQ, D))

    # The PyTorch module keeps two identical tables and picks one by GPU id
    # (x.get_device()); on TPU a single table gives identical results.
    out = positional_encoding(x, table)
    out = jax.block_until_ready(out)

    # Reference check (plain JAX broadcast add)
    ref = x + table[:S, :][None, :, :]
    np.testing.assert_allclose(np.asarray(out), np.asarray(ref), rtol=1e-6, atol=1e-6)

    print("KERNEL_OK")
</pallas_src>

<mosaic_0001>
module attributes {stable_mosaic.version = 11 : i64} {
  func.func @_pe_add_resident_kernel(%arg0: i32, %arg1: i32, %arg2: memref<1x2x128xf32, #tpu.memory_space<vmem>>, %arg3: memref<2x128xf32, #tpu.memory_space<vmem>>, %arg4: memref<1x2x128xf32, #tpu.memory_space<vmem>>) attributes {dimension_semantics = [#tpu.dimension_semantics<parallel>, #tpu.dimension_semantics<arbitrary>], iteration_bounds = array<i64: 1, 2>, scalar_prefetch = 0 : i64, scratch_operands = 0 : i64, tpu.core_type = #tpu.core_type<tc>, window_params = [{transform_indices = @transform_0, window_bounds = array<i64: 1, 2, 128>}, {pipeline_mode = #tpu.pipeline_mode<synchronous>, transform_indices = @transform_1, window_bounds = array<i64: 2, 128>}, {transform_indices = @transform_2, window_bounds = array<i64: 1, 2, 128>}]} {
    %c2_i32 = arith.constant 2 : i32
    %0 = arith.muli %arg0, %c2_i32 : i32
    %1 = tpu.assume_multiple %0, 2 : i32
    %c0 = arith.constant 0 : index
    %c0_0 = arith.constant 0 : index
    %c0_1 = arith.constant 0 : index
    %2 = vector.load %arg2[%c0, %c0_0, %c0_1] : memref<1x2x128xf32, #tpu.memory_space<vmem>>, vector<1x2x128xf32>
    %3 = vector.shape_cast %2 : vector<1x2x128xf32> to vector<2x128xf32>
    %4 = arith.index_cast %1 : i32 to index
    %c0_2 = arith.constant 0 : index
    %5 = vector.load %arg3[%4, %c0_2] : memref<2x128xf32, #tpu.memory_space<vmem>>, vector<2x128xf32>
    %6 = arith.addf %3, %5 : vector<2x128xf32>
    %c0_3 = arith.constant 0 : index
    %c0_4 = arith.constant 0 : index
    %c0_5 = arith.constant 0 : index
    %7 = vector.load %arg4[%c0_3, %c0_4, %c0_5] : memref<1x2x128xf32, #tpu.memory_space<vmem>>, vector<1x2x128xf32>
    %8 = vector.shape_cast %7 : vector<1x2x128xf32> to vector<2x128xf32>
    %9 = vector.shape_cast %6 : vector<2x128xf32> to vector<1x2x128xf32>
    tpu.vector_store %arg4[%c0_3, %c0_4, %c0_5], %9 {strides = array<i32>} : memref<1x2x128xf32, #tpu.memory_space<vmem>>, vector<1x2x128xf32>,
    return
  }
  func.func @transform_0(%arg0: i32, %arg1: i32) -> (i32, i32, i32) {
    %c0_i32 = arith.constant 0 : i32
    %c0_i32_0 = arith.constant 0 : i32
    return %arg1, %arg0, %c0_i32 : i32, i32, i32
  }
  func.func @transform_1(%arg0: i32, %arg1: i32) -> (i32, i32) {
    %c0_i32 = arith.constant 0 : i32
    %c0_i32_0 = arith.constant 0 : i32
    %c0_i32_1 = arith.constant 0 : i32
    return %c0_i32, %c0_i32_0 : i32, i32
  }
  func.func @transform_2(%arg0: i32, %arg1: i32) -> (i32, i32, i32) {
    %c0_i32 = arith.constant 0 : i32
    %c0_i32_0 = arith.constant 0 : i32
    return %arg1, %arg0, %c0_i32 : i32, i32, i32
  }
}

</mosaic_0001>

<llo_original>
// kernel: tpu_custom_call.1
$region0: #{tpu_custom_call.1}
  #allocation0 [shape = 'u32[]', space=smem, size = 0x4, offset = 0x4, fixed_abs, tag = 'smem constant byte address 0x4 - core index']
  #allocation1 [shape = 'u32[144,128]{1,0:T(1,128)}', space=vmem, size = 0x12000, scoped, tag = 'internal scratch']
  %s0 = inlined_call_operand.hbm [shape: f32[2,2,128], index: 0, kind: input, shape index: {}]
  %s1 = inlined_call_operand.hbm [shape: f32[2,128], index: 1, kind: input, shape index: {}]
  %s2 = inlined_call_operand.hbm [shape: f32[2,2,128], index: 2, kind: output, shape index: {}]
  %s3 = sld [smem:[#allocation0]]
  $region49: #{tpu_custom_call.1} parent=0
    _
  %s5 = ssub.s32 1, %s3
  %s6 = scalar_select 0, %s5, %s3
  $region1: #{tpu_custom_call.1} parent=0
    #allocation2 [shape = 'u8[2048]{0}', space=vmem, size = 0x800, scoped, tag = 'input window, operand 0']
    #allocation3 [shape = 's32[2]{0}', space=sflag, size = 0x8, scoped, tag = 'scoped memory for tpu_custom_call.1']
    #allocation4 [shape = 's32[2]{0}', space=sflag, size = 0x8, scoped, tag = 'scoped memory for tpu_custom_call.1']
    #allocation5 [shape = 'u8[1024]{0}', space=vmem, size = 0x400, scoped, tag = 'input window, operand 1, single buffered']
    #allocation6 [shape = 's32[1]{0}', space=sflag, size = 0x4, scoped, tag = 'scoped memory for tpu_custom_call.1']
    #allocation7 [shape = 'u8[2048]{0}', space=vmem, size = 0x800, scoped, tag = 'output window, operand 0']
    %7 = vsyncpa [#allocation3], 0
    %s8 = scalar_lea.sflag [#allocation3], 1
    %9 = vsyncpa %s8, 0
    %10 = vsyncpa [#allocation6], 0
    %11 = vsyncpa [#allocation4], 0
    %s12 = scalar_lea.sflag [#allocation4], 1
    %13 = vsyncpa %s12, 0
    loop: start=0, step=1, limit=4
    $region2: #{tpu_custom_call.1} parent=1 // loop_pre_header
      _
    $region3: #{tpu_custom_call.1} parent=1 // loop_header
      %s15 = sphi 0, %s19
      %p16 = scmp.ge.s32.totalorder %s15, 4
      %s22 = sphi 0, %s34
      %s23 = sphi 0, %s30
      %s24 = sphi 0, %s22
      %s25 = sphi 0, %s23
      %s26 = sphi 0, %s24
      %s27 = sphi 0, %s25
      %s39 = sphi 0, %s41
      %s42 = sphi 0, %s39
      %s43 = sphi 0, %s42
      %s59 = sphi 0, %s43
      %s63 = sphi 0, %s63
      %s65 = sphi 0, %s63
      %s66 = sphi 0, %s65
      %s80 = sphi 0, %s66
      %s88 = sphi 0, %s90
      %s91 = sphi 0, %s88
      %s92 = sphi 0, %s91
      %s108 = sphi 0, %s92
    $region4: #{tpu_custom_call.1} parent=1 // loop_header_branch
      %18 = sbr.rel (%p16) target = $region8
    $region5: #{tpu_custom_call.1} parent=1 // loop_body
      %s20 = ssub.s32 %s15, 1
      %s21 = ssub.s32 %s15, 2
      %s28 = sadd.s32 1, %s23
      %p29 = scmp.ge.s32.totalorder %s28, 2
      %s30 = scalar_select %p29, 0, %s28
      %s31 = sadd.s32 1, %s22
      %s32 = scalar_select %p29, %s31, %s22
      %p33 = scmp.ge.s32.totalorder %s32, 1
      %s34 = scalar_select %p33, 0, %s32
      %s35 = ssub.s32 %s23, %s30
      %s36 = ssub.s32 %s22, %s34
      %s37 = sor.u32 %s35, %s36
      %p38 = scmp.eq.s32.totalorder %s37, 0
      %s40 = sadd.s32 %s39, 1
      %s41 = scalar_select %p38, %s39, %s40
      %p44 = pneg %p38
      %p45 = scmp.eq.s32.totalorder %s15, 1
      %p46 = por %p44, %p45
      %p47 = scmp.ne.s32.totalorder %s39, %s42
      %p48 = scmp.eq.s32.totalorder %s15, 0
      %p49 = por %p47, %p48
      %p50 = scmp.ne.s32.totalorder %s39, %s42
      %p51 = scmp.eq.s32.totalorder %s20, 1
      %p52 = por %p50, %p51
      %p53 = scmp.ne.s32.totalorder %s42, %s43
      %p54 = scmp.eq.s32.totalorder %s20, 0
      %p55 = por %p53, %p54
      %p56 = scmp.ne.s32.totalorder %s42, %s43
      %p57 = scmp.eq.s32.totalorder %s21, 1
      %p58 = por %p56, %p57
      %p60 = scmp.ne.s32.totalorder %s43, %s59
      %p61 = scmp.eq.s32.totalorder %s21, 0
      %p62 = por %p60, %p61
      %s64 = sadd.s32 %s63, 1
      %p67 = scmp.eq.s32.totalorder %s15, 1
      %p68 = scmp.ne.s32.totalorder %s63, %s65
      %p69 = scmp.eq.s32.totalorder %s15, 0
      %p70 = por %p68, %p69
      %p71 = scmp.ne.s32.totalorder %s63, %s65
      %p72 = scmp.eq.s32.totalorder %s20, 1
      %p73 = por %p71, %p72
      %p74 = scmp.ne.s32.totalorder %s65, %s66
      %p75 = scmp.eq.s32.totalorder %s20, 0
      %p76 = por %p74, %p75
      %p77 = scmp.ne.s32.totalorder %s65, %s66
      %p78 = scmp.eq.s32.totalorder %s21, 1
      %p79 = por %p77, %p78
      %p81 = scmp.ne.s32.totalorder %s66, %s80
      %p82 = scmp.eq.s32.totalorder %s21, 0
      %p83 = por %p81, %p82
      %s84 = ssub.s32 %s23, %s30
      %s85 = ssub.s32 %s22, %s34
      %s86 = sor.u32 %s84, %s85
      %p87 = scmp.eq.s32.totalorder %s86, 0
      %s89 = sadd.s32 %s88, 1
      %s90 = scalar_select %p87, %s88, %s89
      %p93 = pneg %p87
      %p94 = scmp.eq.s32.totalorder %s15, 1
      %p95 = por %p93, %p94
      %p96 = scmp.ne.s32.totalorder %s88, %s91
      %p97 = scmp.eq.s32.totalorder %s15, 0
      %p98 = por %p96, %p97
      %p99 = scmp.ne.s32.totalorder %s88, %s91
      %p100 = scmp.eq.s32.totalorder %s20, 1
      %p101 = por %p99, %p100
      %p102 = scmp.ne.s32.totalorder %s91, %s92
      %p103 = scmp.eq.s32.totalorder %s20, 0
      %p104 = por %p102, %p103
      %p105 = scmp.ne.s32.totalorder %s91, %s92
      %p106 = scmp.eq.s32.totalorder %s21, 1
      %p107 = por %p105, %p106
      %p109 = scmp.ne.s32.totalorder %s92, %s108
      %p110 = scmp.eq.s32.totalorder %s21, 0
      %p111 = por %p109, %p110
      %p112 = scmp.le.s32.totalorder 1, %s15
      %p113 = scmp.lt.s32.totalorder %s15, 3
      %p114 = pnand %p112, %p113
      %p115 = pneg %p114
      // Predicated region
      $region9: #{tpu_custom_call.1} parent=5 // pred_check
        _
      $region10: #{tpu_custom_call.1} parent=5 // pred_check_branch
        %117 = sbr.rel (%p114) target = $region12
      $region11: #{tpu_custom_call.1} parent=5 // pred_region
        %s118 = ssub.s32 %s15, 1
        // Predicated region
        $region13: #{tpu_custom_call.1} parent=11 // pred_check
          %p119 = pneg %p76
        $region14: #{tpu_custom_call.1} parent=11 // pred_check_branch
          %121 = sbr.rel (%p119) target = $region16
        $region15: #{tpu_custom_call.1} parent=11 // pred_region
          %s123 = ssub.s32 32, 32
          %124 = vsyncadd [#allocation6], %s123
          %s126 = sshll.u32 [#allocation5], 4
          %s127 = int_to_ptr.vmem [resolvable:$true] %s126
          %129 = dma.hbm_to_vmem [thread:$0]  %s1, 32, %s127, [#allocation6]
        $region16: #{tpu_custom_call.1} parent=11 // pred_fallthru
          _
      $region12: #{tpu_custom_call.1} parent=5 // pred_fallthru
        _
      %p130 = scmp.lt.s32.totalorder %s15, 2
      // Predicated region
      $region17: #{tpu_custom_call.1} parent=5 // pred_check
        %p131 = pneg %p130
      $region18: #{tpu_custom_call.1} parent=5 // pred_check_branch
        %133 = sbr.rel (%p131) target = $region20
      $region19: #{tpu_custom_call.1} parent=5 // pred_region
        // Predicated region
        $region21: #{tpu_custom_call.1} parent=19 // pred_check
          %p134 = pneg %p49
        $region22: #{tpu_custom_call.1} parent=19 // pred_check_branch
          %136 = sbr.rel (%p134) target = $region24
        $region23: #{tpu_custom_call.1} parent=19 // pred_region
          %s137 = sand.u32 %s39, 1
          %s138 = scalar_lea.sflag [#allocation3], %s137
          %s139 = sand.u32 %s39, 1
          %s140 = smul.addr %s139, 2
          %s141 = scalar_lea.vmem [#allocation2], %s140
          %s143 = ssub.s32 32, 32
          %144 = vsyncadd %s138, %s143
          %s145 = sadd.s32 %s22, %s23
          %s146 = smul.addr %s145, 32
          %s147 = scalar_lea.hbm %s0, %s146
          %s149 = sshll.u32 %s141, 4
          %s150 = int_to_ptr.vmem [resolvable:$true] %s149
          %152 = dma.hbm_to_vmem [thread:$0]  %s147, 32, %s150, %s138
        $region24: #{tpu_custom_call.1} parent=19 // pred_fallthru
          _
      $region20: #{tpu_custom_call.1} parent=5 // pred_fallthru
        _
      %p153 = scmp.le.s32.totalorder 1, %s15
      %p154 = scmp.lt.s32.totalorder %s15, 3
      %p155 = pnand %p153, %p154
      %p156 = pneg %p155
      // Predicated region
      $region25: #{tpu_custom_call.1} parent=5 // pred_check
        _
      $region26: #{tpu_custom_call.1} parent=5 // pred_check_branch
        %158 = sbr.rel (%p155) target = $region28
      $region27: #{tpu_custom_call.1} parent=5 // pred_region
        %s159 = ssub.s32 %s15, 1
        %s160 = sand.u32 %s42, 1
        %s161 = scalar_lea.sflag [#allocation3], %s160
        %s162 = sand.u32 %s42, 1
        %s163 = smul.addr %s162, 2
        %s164 = scalar_lea.vmem [#allocation2], %s163
        // Predicated region
        $region29: #{tpu_custom_call.1} parent=27 // pred_check
          %p165 = pneg %p55
        $region30: #{tpu_custom_call.1} parent=27 // pred_check_branch
          %167 = sbr.rel (%p165) target = $region32
        $region31: #{tpu_custom_call.1} parent=27 // pred_region
          %168 = dma.done %s161, 32
        $region32: #{tpu_custom_call.1} parent=27 // pred_fallthru
          _
        // Predicated region
        $region33: #{tpu_custom_call.1} parent=27 // pred_check
          %p169 = pneg %p76
        $region34: #{tpu_custom_call.1} parent=27 // pred_check_branch
          %171 = sbr.rel (%p169) target = $region36
        $region35: #{tpu_custom_call.1} parent=27 // pred_region
          %172 = dma.done [#allocation6], 32
        $region36: #{tpu_custom_call.1} parent=27 // pred_fallthru
          _
        %s173 = sand.u32 %s42, 1
        %s174 = scalar_lea.sflag [#allocation3], %s173
        %s175 = sand.u32 %s42, 1
        %s176 = smul.addr %s175, 2
        %s177 = scalar_lea.vmem [#allocation2], %s176
        %p178 = pneg %p55
        %p179 = pneg %p52
        %p180 = pneg %p76
        %p181 = pneg %p73
        %p182 = pneg %p104
        %p183 = pneg %p101
        %s184 = sand.u32 %s91, 1
        %s185 = scalar_lea.sflag [#allocation4], %s184
        %s186 = sand.u32 %s91, 1
        %s187 = smul.addr %s186, 2
        %s188 = scalar_lea.vmem [#allocation7], %s187
        %s189 = smul.u32 %s24, 2
        %v190 = vld [vmem:[%s164] sm:$0x3]
        %s191 = scalar_lea.vmem [#allocation5], %s189
        %v192 = vld [vmem:[%s191] sm:$0x3]
        %v193 = vadd.f32 %v190, %v192
        %194 = vst [vmem:[%s188] sm:$0x3] %v193
        %s195 = sand.u32 %s91, 1
        %s196 = scalar_lea.sflag [#allocation4], %s195
        %s197 = sand.u32 %s91, 1
        %s198 = smul.addr %s197, 2
        %s199 = scalar_lea.vmem [#allocation7], %s198
        // Predicated region
        $region37: #{tpu_custom_call.1} parent=27 // pred_check
          %p200 = pneg %p101
        $region38: #{tpu_custom_call.1} parent=27 // pred_check_branch
          %202 = sbr.rel (%p200) target = $region40
        $region39: #{tpu_custom_call.1} parent=27 // pred_region
          %s204 = ssub.s32 32, 32
          %205 = vsyncadd %s196, %s204
          %s206 = sadd.s32 %s24, %s25
          %s207 = smul.addr %s206, 32
          %s208 = scalar_lea.hbm %s2, %s207
          %s210 = sshll.u32 %s199, 4
          %s211 = int_to_ptr.vmem [resolvable:$true] %s210
          %213 = dma.vmem_to_hbm [thread:$0]  %s211, 32, %s208, %s196
        $region40: #{tpu_custom_call.1} parent=27 // pred_fallthru
          _
      $region28: #{tpu_custom_call.1} parent=5 // pred_fallthru
        _
      %p214 = scmp.le.s32.totalorder 2, %s15
      // Predicated region
      $region41: #{tpu_custom_call.1} parent=5 // pred_check
        %p215 = pneg %p214
      $region42: #{tpu_custom_call.1} parent=5 // pred_check_branch
        %217 = sbr.rel (%p215) target = $region44
      $region43: #{tpu_custom_call.1} parent=5 // pred_region
        %s218 = ssub.s32 %s15, 2
        // Predicated region
        $region45: #{tpu_custom_call.1} parent=43 // pred_check
          %p219 = pneg %p107
        $region46: #{tpu_custom_call.1} parent=43 // pred_check_branch
          %221 = sbr.rel (%p219) target = $region48
        $region47: #{tpu_custom_call.1} parent=43 // pred_region
          %s222 = sand.u32 %s92, 1
          %s223 = scalar_lea.sflag [#allocation4], %s222
          %s224 = sand.u32 %s92, 1
          %s225 = smul.addr %s224, 2
          %s226 = scalar_lea.vmem [#allocation7], %s225
          %227 = dma.done %s223, 32
        $region48: #{tpu_custom_call.1} parent=43 // pred_fallthru
          _
      $region44: #{tpu_custom_call.1} parent=5 // pred_fallthru
        _
    $region6: #{tpu_custom_call.1} parent=1 // loop_footer
      %s19 = sadd.s32 1, %s15
    $region7: #{tpu_custom_call.1} parent=1 // loop_footer_branch
      %14 = sbr.rel target = $region3
    $region8: #{tpu_custom_call.1} parent=1 // loop_exit
      _
    %228 = vsyncpa [#allocation3], 1
    %s229 = scalar_lea.sflag [#allocation3], 1
    %230 = vsyncpa %s229, 1
    %231 = vsyncpa [#allocation6], 1
    %232 = vsyncpa [#allocation4], 1
    %s233 = scalar_lea.sflag [#allocation4], 1
    %234 = vsyncpa %s233, 1

</llo_original>
